<compile_context>
chip_gen: v7x
topology: tpu7x:2x2x1
jax: 0.10.0
libtpu: 0.0.40
codegen_flags: <defaults>
</compile_context>

<pallas_src>
import jax
import jax.numpy as jnp
from jax.experimental import pallas as pl
from jax.experimental.pallas import tpu as pltpu

_TILE_BYTES = 8 << 20    # per-block payload target (review: 4-8 MiB)
_VMEM_LIMIT = 48 << 20   # 2x(in+out) double-buffered 8 MiB tiles + headroom
_WHOLE_COPY_MAX_PADDED = 8 << 20  # single-block path ceiling (padded bytes)


def _copy_kernel(x_ref, o_ref):
    # Pure identity: whole-tile VMEM load + store.
    o_ref[...] = x_ref[...]


def _sublane_multiple(dtype) -> int:
    """Sublane quantum: f32 -> 8, bf16 -> 16, int8/fp8 -> 32 (packing)."""
    itemsize = jnp.dtype(dtype).itemsize
    return 8 * max(1, 4 // itemsize)


def _padded_vmem_bytes(shape, dtype) -> int:
    """Worst-case VMEM footprint of a whole-array block ((sub,128) tiling)."""
    itemsize = jnp.dtype(dtype).itemsize
    sub = _sublane_multiple(dtype)
    dims = list(shape) if len(shape) > 0 else [1]
    if len(dims) == 1:
        dims = [1] + dims
    last = pl.cdiv(dims[-1], 128) * 128
    second = pl.cdiv(dims[-2], sub) * sub
    rest = 1
    for d in dims[:-2]:
        rest *= int(d)
    return rest * second * last * itemsize


def _pick_block_rows(rows: int, width: int, dtype) -> int:
    """Largest row-block near the 8 MiB target; prefer an even divisor of rows."""
    sub = _sublane_multiple(dtype)
    itemsize = jnp.dtype(dtype).itemsize
    target_rows = max(1, _TILE_BYTES // (width * itemsize))
    if rows <= target_rows or rows <= sub:
        # Single block: block_shape equals the full dim -> exempt from the rule.
        return rows
    block_rows = max(sub, (target_rows // sub) * sub)
    # Prefer a divisor of rows (no masked / short final tile), staying >= 50%
    # of the target so the last tile is never overhead-dominated.
    lo = max(sub, block_rows // 2)
    for cand in range(block_rows, lo - 1, -sub):
        if rows % cand == 0:
            return cand
    return block_rows


def _tiled_copy(slab: jax.Array) -> jax.Array:
    """Tiled identity copy of a (rows, width) slab; width % 128 == 0."""
    rows, width = slab.shape
    itemsize = jnp.dtype(slab.dtype).itemsize
    block_rows = _pick_block_rows(rows, width, slab.dtype)
    grid = (pl.cdiv(rows, block_rows),)
    return pl.pallas_call(
        _copy_kernel,
        out_shape=jax.ShapeDtypeStruct(slab.shape, slab.dtype),
        grid=grid,
        in_specs=[pl.BlockSpec((block_rows, width), lambda i: (i, 0))],
        out_specs=pl.BlockSpec((block_rows, width), lambda i: (i, 0)),
        compiler_params=pltpu.CompilerParams(
            dimension_semantics=("parallel",),  # shards tiles across v7x's 2 TCs
            vmem_limit_bytes=_VMEM_LIMIT,
        ),
        cost_estimate=pl.CostEstimate(
            flops=0, transcendentals=0, bytes_accessed=2 * rows * width * itemsize
        ),
    )(slab)


def _whole_array_copy(x: jax.Array) -> jax.Array:
    """Single full-array block copy (block_shape == array dims, rule-exempt)."""
    itemsize = jnp.dtype(x.dtype).itemsize
    return pl.pallas_call(
        _copy_kernel,
        out_shape=jax.ShapeDtypeStruct(x.shape, x.dtype),
        compiler_params=pltpu.CompilerParams(vmem_limit_bytes=_VMEM_LIMIT),
        cost_estimate=pl.CostEstimate(
            flops=0, transcendentals=0, bytes_accessed=2 * x.size * itemsize
        ),
    )(x)


def _lane_tiled_copy(flat: jax.Array) -> jax.Array:
    """Ragged large arrays: (1, n) view tiled along lanes; masked final tile.
    Keeps HBM traffic at exactly 1 read + 1 write (no pad / post-slice)."""
    (n,) = flat.shape
    itemsize = jnp.dtype(flat.dtype).itemsize
    sub = _sublane_multiple(flat.dtype)
    # Budget ~4 MiB VMEM per buffer even under worst-case sublane padding of a
    # single-row block, so 4 buffers stay well under the 48 MiB limit.
    wb = max(128, ((4 << 20) // (sub * itemsize)) // 128 * 128)
    wb = min(wb, pl.cdiv(n, 128) * 128)
    slab = flat.reshape(1, n)
    grid = (pl.cdiv(n, wb),)
    out = pl.pallas_call(
        _copy_kernel,
        out_shape=jax.ShapeDtypeStruct((1, n), flat.dtype),
        grid=grid,
        in_specs=[pl.BlockSpec((1, wb), lambda i: (0, i))],
        out_specs=pl.BlockSpec((1, wb), lambda i: (0, i)),
        compiler_params=pltpu.CompilerParams(
            dimension_semantics=("parallel",),
            vmem_limit_bytes=_VMEM_LIMIT,
        ),
        cost_estimate=pl.CostEstimate(
            flops=0, transcendentals=0, bytes_accessed=2 * n * itemsize
        ),
    )(slab)
    return out.reshape(n)


def qat_module_example_forward(
    x: jax.Array,
    *,
    donated: bool = False,
    small_bypass_bytes: int = 0,
) -> jax.Array:
    """Identity forward (QATModuleExampleImpl.forward) as a Pallas copy kernel.

    donated: caller owns/donates the input buffer -> a pure identity needs no
      HBM traffic at all, so we return the input directly (no kernel).
    small_bypass_bytes: optional threshold below which the kernel launch is
      skipped (fixed launch + DMA setup dominates for tiny activations);
      default 0 so the kernel always runs.
    """
    # NOTE: identity semantics only hold for the example qconfig path; a real
    # fake-quant observer would be a different (non-identity) kernel.
    if donated or x.ndim == 0:
        return x
    n = x.size
    if n == 0:
        return x
    itemsize = jnp.dtype(x.dtype).itemsize
    if n * itemsize <= small_bypass_bytes:
        return x

    orig_shape = x.shape
    flat = x.reshape(-1)

    # Aligned fast path: widest lane-dense width that evenly divides n.
    # Partial last row-blocks are legal (rule applies to block_shape), so no
    # divisibility constraint on the row count.
    for width in (16384, 8192, 4096, 2048, 1024, 512, 256, 128):
        if n % width == 0:
            out = _tiled_copy(flat.reshape(n // width, width))
            return out.reshape(orig_shape)

    # Ragged (n not a multiple of 128).
    if _padded_vmem_bytes(orig_shape, x.dtype) <= _WHOLE_COPY_MAX_PADDED:
        return _whole_array_copy(x)           # single block, no reshape/pad
    return _lane_tiled_copy(flat).reshape(orig_shape)  # large ragged, masked tail


if __name__ == "__main__":
    key = jax.random.PRNGKey(0)
    k0, k1, k2, k3, k4 = jax.random.split(key, 5)

    # Small NCHW activation consistent with the module (identity pass-through).
    x = jax.random.normal(k0, (2, 4, 16, 16), dtype=jnp.float32)
    y = qat_module_example_forward(x)
    jax.block_until_ready(y)
    assert y.shape == x.shape and y.dtype == x.dtype
    assert bool(jnp.array_equal(y, x))

    # Aligned wide-slab path, single 4 MiB block.
    x2 = jax.random.normal(k1, (4, 16, 128, 128), dtype=jnp.float32)
    y2 = qat_module_example_forward(x2)
    jax.block_until_ready(y2)
    assert y2.shape == x2.shape and y2.dtype == x2.dtype
    assert bool(jnp.array_equal(y2, x2))

    # Aligned multi-tile path (16 MiB -> grid of 2 x 8 MiB tiles).
    x3 = jax.random.normal(k2, (8, 32, 128, 128), dtype=jnp.float32)
    y3 = qat_module_example_forward(x3)
    jax.block_until_ready(y3)
    assert y3.shape == x3.shape and y3.dtype == x3.dtype
    assert bool(jnp.array_equal(y3, x3))

    # Small ragged path (single whole-array block, packed dtype).
    x4 = jax.random.normal(k3, (3, 5, 7), dtype=jnp.bfloat16)
    y4 = qat_module_example_forward(x4)
    jax.block_until_ready(y4)
    assert y4.shape == x4.shape and y4.dtype == x4.dtype
    assert bool(jnp.array_equal(y4, x4))

    # Large ragged path (lane-tiled (1, n) view with masked final tile).
    x5 = jax.random.normal(k4, (2051, 2051), dtype=jnp.float32)
    y5 = qat_module_example_forward(x5)
    jax.block_until_ready(y5)
    assert y5.shape == x5.shape and y5.dtype == x5.dtype
    assert bool(jnp.array_equal(y5, x5))

    # Donated-input short circuit (no kernel, no HBM traffic).
    y6 = qat_module_example_forward(x, donated=True)
    assert y6 is x

    print("KERNEL_OK")
</pallas_src>

<mosaic_0001>
module attributes {stable_mosaic.version = 11 : i64} {
  func.func @_copy_kernel(%arg0: i32, %arg1: memref<1x2048xf32, #tpu.memory_space<vmem>>, %arg2: memref<1x2048xf32, #tpu.memory_space<vmem>>) attributes {dimension_semantics = [#tpu.dimension_semantics<parallel>], iteration_bounds = array<i64: 1>, scalar_prefetch = 0 : i64, scratch_operands = 0 : i64, tpu.core_type = #tpu.core_type<tc>, window_params = [{transform_indices = @transform_0, window_bounds = array<i64: 1, 2048>}, {transform_indices = @transform_1, window_bounds = array<i64: 1, 2048>}]} {
    %c0 = arith.constant 0 : index
    %c0_0 = arith.constant 0 : index
    %0 = vector.load %arg1[%c0, %c0_0] : memref<1x2048xf32, #tpu.memory_space<vmem>>, vector<1x2048xf32>
    %c0_1 = arith.constant 0 : index
    %c0_2 = arith.constant 0 : index
    %1 = vector.load %arg2[%c0_1, %c0_2] : memref<1x2048xf32, #tpu.memory_space<vmem>>, vector<1x2048xf32>
    tpu.vector_store %arg2[%c0_1, %c0_2], %0 {strides = array<i32>} : memref<1x2048xf32, #tpu.memory_space<vmem>>, vector<1x2048xf32>,
    return
  }
  func.func @transform_0(%arg0: i32) -> (i32, i32) {
    %c0_i32 = arith.constant 0 : i32
    %c0_i32_0 = arith.constant 0 : i32
    return %arg0, %c0_i32 : i32, i32
  }
  func.func @transform_1(%arg0: i32) -> (i32, i32) {
    %c0_i32 = arith.constant 0 : i32
    %c0_i32_0 = arith.constant 0 : i32
    return %arg0, %c0_i32 : i32, i32
  }
}

</mosaic_0001>

<llo_original>
// kernel: tpu_custom_call.1
$region0: #{tpu_custom_call.1}
  #allocation0 [shape = 'u32[]', space=smem, size = 0x4, offset = 0x4, fixed_abs, tag = 'smem constant byte address 0x4 - core index']
  #allocation1 [shape = 'u32[144,128]{1,0:T(1,128)}', space=vmem, size = 0x12000, scoped, tag = 'internal scratch']
  %s0 = inlined_call_operand.hbm [shape: f32[1,2048], index: 0, kind: input, shape index: {}]
  %s1 = inlined_call_operand.hbm [shape: f32[1,2048], index: 1, kind: output, shape index: {}]
  %s2 = sld [smem:[#allocation0]]
  $region18: #{tpu_custom_call.1} parent=0
    _
  %s4 = ssub.s32 1, %s2
  %s5 = scalar_select 0, %s4, %s2
  $region1: #{tpu_custom_call.1} parent=0
    #allocation2 [shape = 'u8[8192]{0}', space=vmem, size = 0x2000, scoped, tag = 'input window, operand 0, single buffered']
    #allocation3 [shape = 's32[1]{0}', space=sflag, size = 0x4, scoped, tag = 'scoped memory for tpu_custom_call.1']
    #allocation4 [shape = 's32[1]{0}', space=sflag, size = 0x4, scoped, tag = 'scoped memory for tpu_custom_call.1']
    #allocation5 [shape = 'u8[8192]{0}', space=vmem, size = 0x2000, scoped, tag = 'output window, operand 0, single buffered']
    %6 = vsyncpa [#allocation3], 0
    %7 = vsyncpa [#allocation4], 0
    // Predicated region
    $region2: #{tpu_custom_call.1} parent=1 // pred_check
      _
    $region3: #{tpu_custom_call.1} parent=1 // pred_check_branch
      %9 = sbr.rel (0) target = $region5
    $region4: #{tpu_custom_call.1} parent=1 // pred_region
      %s11 = ssub.s32 256, 256
      %12 = vsyncadd [#allocation3], %s11
      %s14 = sshll.u32 [#allocation2], 4
      %s15 = int_to_ptr.vmem [resolvable:$true] %s14
      %17 = dma.hbm_to_vmem [thread:$0]  %s0, 256, %s15, [#allocation3]
    $region5: #{tpu_custom_call.1} parent=1 // pred_fallthru
      _
    // Predicated region
    $region6: #{tpu_custom_call.1} parent=1 // pred_check
      _
    $region7: #{tpu_custom_call.1} parent=1 // pred_check_branch
      %19 = sbr.rel (0) target = $region9
    $region8: #{tpu_custom_call.1} parent=1 // pred_region
      %20 = dma.done [#allocation3], 256
    $region9: #{tpu_custom_call.1} parent=1 // pred_fallthru
      _
    %v21 = vld [vmem:[#allocation2] sm:$0xff]
    %v22 = vld [vmem:[#allocation2 + $0x8] sm:$0xff]
    %23 = vst [vmem:[#allocation5] sm:$0xff] %v21
    %24 = vst [vmem:[#allocation5 + $0x8] sm:$0xff] %v22
    // Predicated region
    $region10: #{tpu_custom_call.1} parent=1 // pred_check
      _
    $region11: #{tpu_custom_call.1} parent=1 // pred_check_branch
      %26 = sbr.rel (0) target = $region13
    $region12: #{tpu_custom_call.1} parent=1 // pred_region
      %s28 = ssub.s32 256, 256
      %29 = vsyncadd [#allocation4], %s28
      %s31 = sshll.u32 [#allocation5], 4
      %s32 = int_to_ptr.vmem [resolvable:$true] %s31
      %34 = dma.vmem_to_hbm [thread:$0]  %s32, 256, %s1, [#allocation4]
    $region13: #{tpu_custom_call.1} parent=1 // pred_fallthru
      _
    // Predicated region
    $region14: #{tpu_custom_call.1} parent=1 // pred_check
      _
    $region15: #{tpu_custom_call.1} parent=1 // pred_check_branch
      %36 = sbr.rel (0) target = $region17
    $region16: #{tpu_custom_call.1} parent=1 // pred_region
      %37 = dma.done [#allocation4], 256
    $region17: #{tpu_custom_call.1} parent=1 // pred_fallthru
      _
    %38 = vsyncpa [#allocation3], 1
    %39 = vsyncpa [#allocation4], 1

</llo_original>
